<compile_context>
chip_gen: v7x
topology: tpu7x:2x2x1
jax: 0.10.0
libtpu: 0.0.40
codegen_flags: <defaults>
</compile_context>

<pallas_src>
import functools

import numpy as np

import jax
import jax.numpy as jnp
from jax.experimental import pallas as pl
from jax.experimental.pallas import tpu as pltpu


# ----------------------------------------------------------------------------
# Pallas kernels
# ----------------------------------------------------------------------------
def _make_seg_kernel(n_layers, compute_dtype):
    """Fused per-point MLP (segmentation path).

    refs: x (BB, C, TN) in the caller's native dtype,
          w_0..w_{L-1} ((Cout_i, Cin_i)) in compute_dtype,
          b (NC, 1) f32, o (BB, NC, TN).
    BB is the number of batch rows folded into one block (1 or B).
    """

    def kernel(x_ref, *rest):
        w_refs = rest[:n_layers]
        b_ref = rest[n_layers]
        o_ref = rest[n_layers + 1]

        # Hoisted once per grid step (outside the unrolled batch/layer loops).
        w_vals = [w_ref[...] for w_ref in w_refs]
        b_f32 = b_ref[...].astype(jnp.float32)

        for bb in range(x_ref.shape[0]):               # static batch rows
            # In-kernel cast: DMA moves the native (f32) tile; the bf16 cast
            # is cheap VPU work instead of an extra HBM round-trip.
            h = x_ref[bb].astype(compute_dtype)         # (C, TN), N on lanes
            for li, w in enumerate(w_vals):              # static layer chain
                y = jnp.dot(w, h, preferred_element_type=jnp.float32)
                if li < n_layers - 1:                    # hidden convs: ReLU
                    h = jnp.maximum(y, 0.0).astype(compute_dtype)
                else:                                    # last conv: +bias
                    h = y + b_f32
            o_ref[bb] = h.astype(o_ref.dtype)

    return kernel


def _make_cls_kernel(n_layers, compute_dtype):
    """Classification path: global max over N fused with the MLP.

    grid = (B, N_tiles); the tile axis is a reduction ("arbitrary", innermost).
    The running max is kept lane-replicated at (C, 128) so the final MLP
    matmuls keep full lane width.
    """

    def kernel(x_ref, *rest):
        w_refs = rest[:n_layers]
        b_ref = rest[n_layers]
        o_ref = rest[n_layers + 1]
        xmax_ref = rest[n_layers + 2]

        t = pl.program_id(1)

        @pl.when(t == 0)
        def _():
            xmax_ref[...] = jnp.full_like(xmax_ref, -jnp.inf)

        # Max in the input's native precision (f32) -> exact vs the reference.
        tile_max = jnp.max(x_ref[0], axis=1, keepdims=True).astype(jnp.float32)
        xmax_ref[...] = jnp.maximum(xmax_ref[...], tile_max)   # (C,1)->(C,128)

        @pl.when(t == pl.num_programs(1) - 1)
        def _():
            b_f32 = b_ref[...].astype(jnp.float32)
            h = xmax_ref[...].astype(compute_dtype)             # (C, 128)
            for li, w_ref in enumerate(w_refs):
                y = jnp.dot(w_ref[...], h, preferred_element_type=jnp.float32)
                if li < n_layers - 1:
                    h = jnp.maximum(y, 0.0).astype(compute_dtype)
                else:
                    h = y + b_f32
            o_ref[0] = h[:, :1].astype(o_ref.dtype)             # (NC, 1)

    return kernel


# ----------------------------------------------------------------------------
# Tiling helpers
# ----------------------------------------------------------------------------
def _pick_n_tile(n, max_cols):
    """Largest lane-dense tile over the point axis.

    Prefers the full dim when it fits the VMEM budget; otherwise the largest
    divisor of N that is a multiple of 128 and <= max_cols.
    """
    if n <= max_cols:
        return n                         # full dim (always a legal block)
    if n % 128 != 0:
        # Non-128-divisible N only admits a full-dim block; raise the budget
        # (vmem_budget_bytes) for such shapes instead of an illegal tile.
        return n
    best = 128
    d = 128
    while d <= max_cols:
        if n % d == 0:
            best = d
        d += 128
    return best


# ----------------------------------------------------------------------------
# Wrapper
# ----------------------------------------------------------------------------
def head_forward(points_fea, weights, bias, *, task_type="segmentation",
                 compute_dtype=jnp.bfloat16, out_dtype=None,
                 vmem_budget_bytes=8 * 1024 * 1024):
    """points_fea: (B, C, N) channel-first (native dtype, no wrapper cast).
    weights: list of (Cout_i, Cin_i) matrices (1x1-conv kernels; hidden convs
    are bias-free + ReLU, the last conv has `bias` and no activation).
    Returns (B, num_class, N) for segmentation or (B, num_class, 1) for
    classification — already channel-first, no wrapper transposes.

    vmem_budget_bytes sizes the double-buffered x/out tiles; the 8 MiB default
    is safe under v5e's 16 MiB scoped limit and v7x's 64 MiB physical VMEM."""
    B, C, N = points_fea.shape
    n_layers = len(weights)
    num_class = weights[-1].shape[0]
    out_dtype = np.dtype(points_fea.dtype if out_dtype is None else out_dtype)

    ws = [w.astype(compute_dtype) for w in weights]   # tiny, fetched once
    b = bias.reshape(num_class, 1).astype(jnp.float32)

    # ---- lane-dense tile over the point axis, sized from a VMEM budget ----
    in_bytes = np.dtype(points_fea.dtype).itemsize
    out_bytes = out_dtype.itemsize
    # bytes per lane-column of one batch row: double-buffered x + out blocks
    per_col = 2 * (C * in_bytes + num_class * out_bytes)
    max_cols = max(128, (vmem_budget_bytes // per_col) // 128 * 128)
    tn = _pick_n_tile(N, max_cols)
    n_tiles = N // tn

    w_specs = [pl.BlockSpec(w.shape, lambda i, j: (0, 0)) for w in ws]
    b_spec = pl.BlockSpec((num_class, 1), lambda i, j: (0, 0))

    if task_type == "classification":
        x_spec = pl.BlockSpec((1, C, tn), lambda i, j: (i, 0, j))
        return pl.pallas_call(
            _make_cls_kernel(n_layers, compute_dtype),
            out_shape=jax.ShapeDtypeStruct((B, num_class, 1), out_dtype),
            grid=(B, n_tiles),
            in_specs=[x_spec] + w_specs + [b_spec],
            out_specs=pl.BlockSpec((1, num_class, 1), lambda i, j: (i, 0, 0)),
            scratch_shapes=[pltpu.VMEM((C, 128), jnp.float32)],
            compiler_params=pltpu.CompilerParams(
                # keep the reduction (tile) axis innermost / "arbitrary"
                dimension_semantics=("parallel", "arbitrary")),
        )(points_fea, *ws, b)

    # Segmentation: fold the batch dim into the block when it still leaves
    # >= 2 parallel grid points (v7x has 2 TCs) and fits the VMEM budget.
    fold = (B == 1) or (n_tiles >= 2 and B * per_col * tn <= vmem_budget_bytes)
    bb = B if fold else 1
    x_spec = pl.BlockSpec((bb, C, tn), lambda i, j: (i, 0, j))
    o_spec = pl.BlockSpec((bb, num_class, tn), lambda i, j: (i, 0, j))
    return pl.pallas_call(
        _make_seg_kernel(n_layers, compute_dtype),
        out_shape=jax.ShapeDtypeStruct((B, num_class, N), out_dtype),
        grid=(B // bb, n_tiles),
        in_specs=[x_spec] + w_specs + [b_spec],
        out_specs=o_spec,
        compiler_params=pltpu.CompilerParams(
            dimension_semantics=("parallel", "parallel")),
    )(points_fea, *ws, b)


# ----------------------------------------------------------------------------
# Pure-JAX reference (mirrors the PyTorch Head forward in eval mode)
# ----------------------------------------------------------------------------
def head_reference(points_fea, weights, bias, *, task_type="segmentation"):
    x = points_fea
    if task_type == "classification":
        x = jnp.max(x, axis=-1, keepdims=True)
    for i, w in enumerate(weights):
        x = jnp.einsum("oc,bcn->bon", w, x)
        if i < len(weights) - 1:
            x = jnp.maximum(x, 0.0)
        else:
            x = x + bias[None, :, None]
    return x


# ----------------------------------------------------------------------------
# Main
# ----------------------------------------------------------------------------
if __name__ == "__main__":
    B, C, N = 2, 64, 384          # N = 384: full-N tile by default
    mlp_channels = [64, 32]       # Head(in_channel=C, mlp=[64, 32], ...)
    num_class = 16

    key = jax.random.PRNGKey(0)
    k1, k2, k3, k4, k5 = jax.random.split(key, 5)
    weights = [
        jax.random.normal(k1, (mlp_channels[0], C), jnp.float32) * 0.1,
        jax.random.normal(k2, (mlp_channels[1], mlp_channels[0]),
                          jnp.float32) * 0.1,
        jax.random.normal(k3, (num_class, mlp_channels[1]), jnp.float32) * 0.1,
    ]
    bias = jax.random.normal(k4, (num_class,), jnp.float32) * 0.1
    points_fea = jax.random.normal(k5, (B, C, N), jnp.float32)

    # Default config: single full-N tile per (b,) step; f32 compute for the
    # exactness check, bf16 compute for the perf configuration.
    seg_f32 = jax.jit(functools.partial(
        head_forward, task_type="segmentation", compute_dtype=jnp.float32))
    cls_f32 = jax.jit(functools.partial(
        head_forward, task_type="classification", compute_dtype=jnp.float32))
    seg_bf16 = jax.jit(functools.partial(head_forward, task_type="segmentation"))
    cls_bf16 = jax.jit(functools.partial(head_forward, task_type="classification"))
    # Tiny VMEM budget -> forces tn=128 (3 tiles): exercises batch folding in
    # the segmentation path and the multi-tile max accumulator in the cls path.
    seg_tiled = jax.jit(functools.partial(
        head_forward, task_type="segmentation", compute_dtype=jnp.float32,
        vmem_budget_bytes=200_000))
    cls_tiled = jax.jit(functools.partial(
        head_forward, task_type="classification", compute_dtype=jnp.float32,
        vmem_budget_bytes=200_000))

    outs = {}
    for name, fn in [("seg_f32", seg_f32), ("cls_f32", cls_f32),
                     ("seg_bf16", seg_bf16), ("cls_bf16", cls_bf16),
                     ("seg_tiled", seg_tiled), ("cls_tiled", cls_tiled)]:
        outs[name] = fn(points_fea, weights, bias)
    jax.block_until_ready(outs)

    ref_seg = head_reference(points_fea, weights, bias,
                             task_type="segmentation")
    ref_cls = head_reference(points_fea, weights, bias,
                             task_type="classification")

    assert outs["seg_f32"].shape == (B, num_class, N), outs["seg_f32"].shape
    assert outs["cls_f32"].shape == (B, num_class, 1), outs["cls_f32"].shape
    # exact (f32 compute) checks, both tiling configurations
    for name in ("seg_f32", "seg_tiled"):
        err = float(jnp.max(jnp.abs(outs[name] - ref_seg)))
        assert bool(jnp.allclose(outs[name], ref_seg, atol=1e-4, rtol=1e-3)), \
            (name, err)
    for name in ("cls_f32", "cls_tiled"):
        err = float(jnp.max(jnp.abs(outs[name] - ref_cls)))
        assert bool(jnp.allclose(outs[name], ref_cls, atol=1e-4, rtol=1e-3)), \
            (name, err)
    # bf16 compute sanity checks against the f32 reference
    assert bool(jnp.all(jnp.isfinite(outs["seg_bf16"])))
    assert bool(jnp.all(jnp.isfinite(outs["cls_bf16"])))
    assert bool(jnp.allclose(outs["seg_bf16"], ref_seg, atol=1e-1, rtol=5e-2)), \
        float(jnp.max(jnp.abs(outs["seg_bf16"] - ref_seg)))
    assert bool(jnp.allclose(outs["cls_bf16"], ref_cls, atol=1e-1, rtol=5e-2)), \
        float(jnp.max(jnp.abs(outs["cls_bf16"] - ref_cls)))

    print("KERNEL_OK")
</pallas_src>

<mosaic_0001>
module attributes {stable_mosaic.version = 11 : i64} {
  func.func @kernel(%arg0: i32, %arg1: i32, %arg2: memref<1x64x384xf32, #tpu.memory_space<vmem>>, %arg3: memref<64x64xf32, #tpu.memory_space<vmem>>, %arg4: memref<32x64xf32, #tpu.memory_space<vmem>>, %arg5: memref<16x32xf32, #tpu.memory_space<vmem>>, %arg6: memref<16x1xf32, #tpu.memory_space<vmem>>, %arg7: memref<1x16x384xf32, #tpu.memory_space<vmem>>) attributes {dimension_semantics = [#tpu.dimension_semantics<parallel>, #tpu.dimension_semantics<parallel>], iteration_bounds = array<i64: 2, 1>, scalar_prefetch = 0 : i64, scratch_operands = 0 : i64, tpu.core_type = #tpu.core_type<tc>, window_params = [{transform_indices = @transform_0, window_bounds = array<i64: 1, 64, 384>}, {pipeline_mode = #tpu.pipeline_mode<synchronous>, transform_indices = @transform_1, window_bounds = array<i64: 64, 64>}, {pipeline_mode = #tpu.pipeline_mode<synchronous>, transform_indices = @transform_2, window_bounds = array<i64: 32, 64>}, {pipeline_mode = #tpu.pipeline_mode<synchronous>, transform_indices = @transform_3, window_bounds = array<i64: 16, 32>}, {pipeline_mode = #tpu.pipeline_mode<synchronous>, transform_indices = @transform_4, window_bounds = array<i64: 16, 1>}, {transform_indices = @transform_5, window_bounds = array<i64: 1, 16, 384>}]} {
    %c0 = arith.constant 0 : index
    %c0_0 = arith.constant 0 : index
    %0 = vector.load %arg3[%c0, %c0_0] : memref<64x64xf32, #tpu.memory_space<vmem>>, vector<64x64xf32>
    %c0_1 = arith.constant 0 : index
    %c0_2 = arith.constant 0 : index
    %1 = vector.load %arg4[%c0_1, %c0_2] : memref<32x64xf32, #tpu.memory_space<vmem>>, vector<32x64xf32>
    %c0_3 = arith.constant 0 : index
    %c0_4 = arith.constant 0 : index
    %2 = vector.load %arg5[%c0_3, %c0_4] : memref<16x32xf32, #tpu.memory_space<vmem>>, vector<16x32xf32>
    %c0_5 = arith.constant 0 : index
    %c0_6 = arith.constant 0 : index
    %3 = vector.load %arg6[%c0_5, %c0_6] : memref<16x1xf32, #tpu.memory_space<vmem>>, vector<16x1xf32>
    %c0_7 = arith.constant 0 : index
    %c0_8 = arith.constant 0 : index
    %c0_9 = arith.constant 0 : index
    %4 = vector.load %arg2[%c0_7, %c0_8, %c0_9] : memref<1x64x384xf32, #tpu.memory_space<vmem>>, vector<1x64x384xf32>
    %5 = vector.shape_cast %4 : vector<1x64x384xf32> to vector<64x384xf32>
    %cst = arith.constant dense<0.000000e+00> : vector<64x384xf32>
    %6 = tpu.matmul %0, %5, %cst {dimension_numbers = #tpu.dot_dimension_numbers<[1], [0], [0], [1], [0, 0, 1, 1], [], []>} : vector<64x64xf32>, vector<64x384xf32>, vector<64x384xf32> -> vector<64x384xf32>
    %cst_10 = arith.constant 0.000000e+00 : f32
    %7 = vector.broadcast %cst_10 : f32 to vector<64x384xf32>
    %8 = arith.maximumf %6, %7 : vector<64x384xf32>
    %cst_11 = arith.constant dense<0.000000e+00> : vector<32x384xf32>
    %9 = tpu.matmul %1, %8, %cst_11 {dimension_numbers = #tpu.dot_dimension_numbers<[1], [0], [0], [1], [0, 0, 1, 1], [], []>} : vector<32x64xf32>, vector<64x384xf32>, vector<32x384xf32> -> vector<32x384xf32>
    %cst_12 = arith.constant 0.000000e+00 : f32
    %10 = vector.broadcast %cst_12 : f32 to vector<32x384xf32>
    %11 = arith.maximumf %9, %10 : vector<32x384xf32>
    %cst_13 = arith.constant dense<0.000000e+00> : vector<16x384xf32>
    %12 = tpu.matmul %2, %11, %cst_13 {dimension_numbers = #tpu.dot_dimension_numbers<[1], [0], [0], [1], [0, 0, 1, 1], [], []>} : vector<16x32xf32>, vector<32x384xf32>, vector<16x384xf32> -> vector<16x384xf32>
    %13 = vector.broadcast %3 : vector<16x1xf32> to vector<16x384xf32>
    %14 = arith.addf %12, %13 : vector<16x384xf32>
    %c0_14 = arith.constant 0 : index
    %c0_15 = arith.constant 0 : index
    %c0_16 = arith.constant 0 : index
    %15 = vector.load %arg7[%c0_14, %c0_15, %c0_16] : memref<1x16x384xf32, #tpu.memory_space<vmem>>, vector<1x16x384xf32>
    %16 = vector.shape_cast %15 : vector<1x16x384xf32> to vector<16x384xf32>
    %17 = vector.shape_cast %14 : vector<16x384xf32> to vector<1x16x384xf32>
    tpu.vector_store %arg7[%c0_14, %c0_15, %c0_16], %17 {strides = array<i32>} : memref<1x16x384xf32, #tpu.memory_space<vmem>>, vector<1x16x384xf32>,
    return
  }
  func.func @transform_0(%arg0: i32, %arg1: i32) -> (i32, i32, i32) {
    %c0_i32 = arith.constant 0 : i32
    %c0_i32_0 = arith.constant 0 : i32
    return %arg0, %c0_i32, %arg1 : i32, i32, i32
  }
  func.func @transform_1(%arg0: i32, %arg1: i32) -> (i32, i32) {
    %c0_i32 = arith.constant 0 : i32
    %c0_i32_0 = arith.constant 0 : i32
    %c0_i32_1 = arith.constant 0 : i32
    return %c0_i32, %c0_i32_0 : i32, i32
  }
  func.func @transform_2(%arg0: i32, %arg1: i32) -> (i32, i32) {
    %c0_i32 = arith.constant 0 : i32
    %c0_i32_0 = arith.constant 0 : i32
    %c0_i32_1 = arith.constant 0 : i32
    return %c0_i32, %c0_i32_0 : i32, i32
  }
  func.func @transform_3(%arg0: i32, %arg1: i32) -> (i32, i32) {
    %c0_i32 = arith.constant 0 : i32
    %c0_i32_0 = arith.constant 0 : i32
    %c0_i32_1 = arith.constant 0 : i32
    return %c0_i32, %c0_i32_0 : i32, i32
  }
  func.func @transform_4(%arg0: i32, %arg1: i32) -> (i32, i32) {
    %c0_i32 = arith.constant 0 : i32
    %c0_i32_0 = arith.constant 0 : i32
    %c0_i32_1 = arith.constant 0 : i32
    return %c0_i32, %c0_i32_0 : i32, i32
  }
  func.func @transform_5(%arg0: i32, %arg1: i32) -> (i32, i32, i32) {
    %c0_i32 = arith.constant 0 : i32
    %c0_i32_0 = arith.constant 0 : i32
    return %arg0, %c0_i32, %arg1 : i32, i32, i32
  }
}

</mosaic_0001>

<llo_original>
// kernel: head_forward.1
$region0: #{head_forward.1}
  #allocation0 [shape = 'u32[]', space=smem, size = 0x4, offset = 0x4, fixed_abs, tag = 'smem constant byte address 0x4 - core index']
  #allocation1 [shape = 'u32[144,128]{1,0:T(1,128)}', space=vmem, size = 0x12000, scoped, tag = 'internal scratch']
  %s0 = inlined_call_operand.hbm [shape: f32[2,64,384], index: 0, kind: input, shape index: {}]
  %s1 = inlined_call_operand.hbm [shape: f32[64,64], index: 1, kind: input, shape index: {}]
  %s2 = inlined_call_operand.hbm [shape: f32[32,64], index: 2, kind: input, shape index: {}]
  %s3 = inlined_call_operand.vmem [shape: f32[16,32], index: 3, kind: input, shape index: {}]
  %s4 = inlined_call_operand.vmem [shape: f32[16,1], index: 4, kind: input, shape index: {}]
  %s5 = inlined_call_operand.hbm [shape: f32[2,16,384], index: 5, kind: output, shape index: {}]
  %s6 = sld [smem:[#allocation0]]
  $region65: #{head_forward.1} parent=0
    _
  %s8 = ssub.s32 1, %s6
  %s9 = scalar_select 0, %s8, %s6
  $region1: #{head_forward.1} parent=0
    #allocation2 [shape = 'u8[196608]{0}', space=vmem, size = 0x30000, scoped, tag = 'input window, operand 0']
    #allocation3 [shape = 's32[2]{0}', space=sflag, size = 0x8, scoped, tag = 'scoped memory for head_forward.1']
    #allocation4 [shape = 's32[2]{0}', space=sflag, size = 0x8, scoped, tag = 'scoped memory for head_forward.1']
    #allocation5 [shape = 'u8[32768]{0}', space=vmem, size = 0x8000, scoped, tag = 'input window, operand 1, single buffered']
    #allocation6 [shape = 's32[1]{0}', space=sflag, size = 0x4, scoped, tag = 'scoped memory for head_forward.1']
    #allocation7 [shape = 'u8[16384]{0}', space=vmem, size = 0x4000, scoped, tag = 'input window, operand 2, single buffered']
    #allocation8 [shape = 'u8[49152]{0}', space=vmem, size = 0xc000, scoped, tag = 'output window, operand 0']
    %10 = vsyncpa [#allocation3], 0
    %s11 = scalar_lea.sflag [#allocation3], 1
    %12 = vsyncpa %s11, 0
    %13 = vsyncpa [#allocation6], 0
    %14 = vsyncpa [#allocation4], 0
    %s15 = scalar_lea.sflag [#allocation4], 1
    %16 = vsyncpa %s15, 0
    loop: start=0, step=1, limit=4
    $region2: #{head_forward.1} parent=1 // loop_pre_header
      _
    $region3: #{head_forward.1} parent=1 // loop_header
      %s18 = sphi 0, %s22
      %p19 = scmp.ge.s32.totalorder %s18, 4
      %s25 = sphi 0, %s37
      %s26 = sphi 0, %s33
      %s27 = sphi 0, %s25
      %s28 = sphi 0, %s26
      %s29 = sphi 0, %s27
      %s30 = sphi 0, %s28
      %s42 = sphi 0, %s44
      %s45 = sphi 0, %s42
      %s46 = sphi 0, %s45
      %s62 = sphi 0, %s46
      %s66 = sphi 0, %s66
      %s68 = sphi 0, %s66
      %s69 = sphi 0, %s68
      %s83 = sphi 0, %s69
      %s87 = sphi 0, %s87
      %s89 = sphi 0, %s87
      %s90 = sphi 0, %s89
      %s104 = sphi 0, %s90
      %s108 = sphi 0, %s108
      %s110 = sphi 0, %s108
      %s111 = sphi 0, %s110
      %s125 = sphi 0, %s111
      %s129 = sphi 0, %s129
      %s131 = sphi 0, %s129
      %s132 = sphi 0, %s131
      %s146 = sphi 0, %s132
      %s154 = sphi 0, %s156
      %s157 = sphi 0, %s154
      %s158 = sphi 0, %s157
      %s174 = sphi 0, %s158
    $region4: #{head_forward.1} parent=1 // loop_header_branch
      %21 = sbr.rel (%p19) target = $region8
    $region5: #{head_forward.1} parent=1 // loop_body
      %s23 = ssub.s32 %s18, 1
      %s24 = ssub.s32 %s18, 2
      %s31 = sadd.s32 1, %s26
      %p32 = scmp.ge.s32.totalorder %s31, 1
      %s33 = scalar_select %p32, 0, %s31
      %s34 = sadd.s32 1, %s25
      %s35 = scalar_select %p32, %s34, %s25
      %p36 = scmp.ge.s32.totalorder %s35, 2
      %s37 = scalar_select %p36, 0, %s35
      %s38 = ssub.s32 %s25, %s37
      %s39 = ssub.s32 %s26, %s33
      %s40 = sor.u32 %s38, %s39
      %p41 = scmp.eq.s32.totalorder %s40, 0
      %s43 = sadd.s32 %s42, 1
      %s44 = scalar_select %p41, %s42, %s43
      %p47 = pneg %p41
      %p48 = scmp.eq.s32.totalorder %s18, 1
      %p49 = por %p47, %p48
      %p50 = scmp.ne.s32.totalorder %s42, %s45
      %p51 = scmp.eq.s32.totalorder %s18, 0
      %p52 = por %p50, %p51
      %p53 = scmp.ne.s32.totalorder %s42, %s45
      %p54 = scmp.eq.s32.totalorder %s23, 1
      %p55 = por %p53, %p54
      %p56 = scmp.ne.s32.totalorder %s45, %s46
      %p57 = scmp.eq.s32.totalorder %s23, 0
      %p58 = por %p56, %p57
      %p59 = scmp.ne.s32.totalorder %s45, %s46
      %p60 = scmp.eq.s32.totalorder %s24, 1
      %p61 = por %p59, %p60
      %p63 = scmp.ne.s32.totalorder %s46, %s62
      %p64 = scmp.eq.s32.totalorder %s24, 0
      %p65 = por %p63, %p64
      %s67 = sadd.s32 %s66, 1
      %p70 = scmp.eq.s32.totalorder %s18, 1
      %p71 = scmp.ne.s32.totalorder %s66, %s68
      %p72 = scmp.eq.s32.totalorder %s18, 0
      %p73 = por %p71, %p72
      %p74 = scmp.ne.s32.totalorder %s66, %s68
      %p75 = scmp.eq.s32.totalorder %s23, 1
      %p76 = por %p74, %p75
      %p77 = scmp.ne.s32.totalorder %s68, %s69
      %p78 = scmp.eq.s32.totalorder %s23, 0
      %p79 = por %p77, %p78
      %p80 = scmp.ne.s32.totalorder %s68, %s69
      %p81 = scmp.eq.s32.totalorder %s24, 1
      %p82 = por %p80, %p81
      %p84 = scmp.ne.s32.totalorder %s69, %s83
      %p85 = scmp.eq.s32.totalorder %s24, 0
      %p86 = por %p84, %p85
      %s88 = sadd.s32 %s87, 1
      %p91 = scmp.eq.s32.totalorder %s18, 1
      %p92 = scmp.ne.s32.totalorder %s87, %s89
      %p93 = scmp.eq.s32.totalorder %s18, 0
      %p94 = por %p92, %p93
      %p95 = scmp.ne.s32.totalorder %s87, %s89
      %p96 = scmp.eq.s32.totalorder %s23, 1
      %p97 = por %p95, %p96
      %p98 = scmp.ne.s32.totalorder %s89, %s90
      %p99 = scmp.eq.s32.totalorder %s23, 0
      %p100 = por %p98, %p99
      %p101 = scmp.ne.s32.totalorder %s89, %s90
      %p102 = scmp.eq.s32.totalorder %s24, 1
      %p103 = por %p101, %p102
      %p105 = scmp.ne.s32.totalorder %s90, %s104
      %p106 = scmp.eq.s32.totalorder %s24, 0
      %p107 = por %p105, %p106
      %s109 = sadd.s32 %s108, 1
      %p112 = scmp.eq.s32.totalorder %s18, 1
      %p113 = scmp.ne.s32.totalorder %s108, %s110
      %p114 = scmp.eq.s32.totalorder %s18, 0
      %p115 = por %p113, %p114
      %p116 = scmp.ne.s32.totalorder %s108, %s110
      %p117 = scmp.eq.s32.totalorder %s23, 1
      %p118 = por %p116, %p117
      %p119 = scmp.ne.s32.totalorder %s110, %s111
      %p120 = scmp.eq.s32.totalorder %s23, 0
      %p121 = por %p119, %p120
      %p122 = scmp.ne.s32.totalorder %s110, %s111
      %p123 = scmp.eq.s32.totalorder %s24, 1
      %p124 = por %p122, %p123
      %p126 = scmp.ne.s32.totalorder %s111, %s125
      %p127 = scmp.eq.s32.totalorder %s24, 0
      %p128 = por %p126, %p127
      %s130 = sadd.s32 %s129, 1
      %p133 = scmp.eq.s32.totalorder %s18, 1
      %p134 = scmp.ne.s32.totalorder %s129, %s131
      %p135 = scmp.eq.s32.totalorder %s18, 0
      %p136 = por %p134, %p135
      %p137 = scmp.ne.s32.totalorder %s129, %s131
      %p138 = scmp.eq.s32.totalorder %s23, 1
      %p139 = por %p137, %p138
      %p140 = scmp.ne.s32.totalorder %s131, %s132
      %p141 = scmp.eq.s32.totalorder %s23, 0
      %p142 = por %p140, %p141
      %p143 = scmp.ne.s32.totalorder %s131, %s132
      %p144 = scmp.eq.s32.totalorder %s24, 1
      %p145 = por %p143, %p144
      %p147 = scmp.ne.s32.totalorder %s132, %s146
      %p148 = scmp.eq.s32.totalorder %s24, 0
      %p149 = por %p147, %p148
      %s150 = ssub.s32 %s25, %s37
      %s151 = ssub.s32 %s26, %s33
      %s152 = sor.u32 %s150, %s151
      %p153 = scmp.eq.s32.totalorder %s152, 0
      %s155 = sadd.s32 %s154, 1
      %s156 = scalar_select %p153, %s154, %s155
      %p159 = pneg %p153
      %p160 = scmp.eq.s32.totalorder %s18, 1
      %p161 = por %p159, %p160
      %p162 = scmp.ne.s32.totalorder %s154, %s157
      %p163 = scmp.eq.s32.totalorder %s18, 0
      %p164 = por %p162, %p163
      %p165 = scmp.ne.s32.totalorder %s154, %s157
      %p166 = scmp.eq.s32.totalorder %s23, 1
      %p167 = por %p165, %p166
      %p168 = scmp.ne.s32.totalorder %s157, %s158
      %p169 = scmp.eq.s32.totalorder %s23, 0
      %p170 = por %p168, %p169
      %p171 = scmp.ne.s32.totalorder %s157, %s158
      %p172 = scmp.eq.s32.totalorder %s24, 1
      %p173 = por %p171, %p172
      %p175 = scmp.ne.s32.totalorder %s158, %s174
      %p176 = scmp.eq.s32.totalorder %s24, 0
      %p177 = por %p175, %p176
      %p178 = scmp.le.s32.totalorder 1, %s18
      %p179 = scmp.lt.s32.totalorder %s18, 3
      %p180 = pnand %p178, %p179
      %p181 = pneg %p180
      // Predicated region
      $region9: #{head_forward.1} parent=5 // pred_check
        _
      $region10: #{head_forward.1} parent=5 // pred_check_branch
        %183 = sbr.rel (%p180) target = $region12
      $region11: #{head_forward.1} parent=5 // pred_region
        %s184 = ssub.s32 %s18, 1
        // Predicated region
        $region13: #{head_forward.1} parent=11 // pred_check
          %p185 = pneg %p79
        $region14: #{head_forward.1} parent=11 // pred_check_branch
          %187 = sbr.rel (%p185) target = $region16
        $region15: #{head_forward.1} parent=11 // pred_region
          %s189 = ssub.s32 1024, 1024
          %190 = vsyncadd [#allocation6], %s189
          %s191 = sshll.u32 [#allocation5], 4
          %s192 = int_to_ptr.vmem [resolvable:$true] %s191
          %197 = dma.hbm_to_vmem [thread:$0]  %s1, 1024, %s192, [#allocation6], 128, 128, 8
        $region16: #{head_forward.1} parent=11 // pred_fallthru
          _
        // Predicated region
        $region17: #{head_forward.1} parent=11 // pred_check
          %p198 = pneg %p100
        $region18: #{head_forward.1} parent=11 // pred_check_branch
          %200 = sbr.rel (%p198) target = $region20
        $region19: #{head_forward.1} parent=11 // pred_region
          %s202 = ssub.s32 512, 512
          %203 = vsyncadd [#allocation6], %s202
          %s204 = sshll.u32 [#allocation7], 4
          %s205 = int_to_ptr.vmem [resolvable:$true] %s204
          %210 = dma.hbm_to_vmem [thread:$0]  %s2, 512, %s205, [#allocation6], 128, 128, 8
        $region20: #{head_forward.1} parent=11 // pred_fallthru
          _
        // Predicated region
        $region21: #{head_forward.1} parent=11 // pred_check
          %p211 = pneg %p121
        $region22: #{head_forward.1} parent=11 // pred_check_branch
          %213 = sbr.rel (%p211) target = $region24
        $region23: #{head_forward.1} parent=11 // pred_region
          _
        $region24: #{head_forward.1} parent=11 // pred_fallthru
          _
        // Predicated region
        $region25: #{head_forward.1} parent=11 // pred_check
          %p214 = pneg %p142
        $region26: #{head_forward.1} parent=11 // pred_check_branch
          %216 = sbr.rel (%p214) target = $region28
        $region27: #{head_forward.1} parent=11 // pred_region
          _
        $region28: #{head_forward.1} parent=11 // pred_fallthru
          _
      $region12: #{head_forward.1} parent=5 // pred_fallthru
        _
      %p217 = scmp.lt.s32.totalorder %s18, 2
      // Predicated region
      $region29: #{head_forward.1} parent=5 // pred_check
        %p218 = pneg %p217
      $region30: #{head_forward.1} parent=5 // pred_check_branch
        %220 = sbr.rel (%p218) target = $region32
      $region31: #{head_forward.1} parent=5 // pred_region
        // Predicated region
        $region33: #{head_forward.1} parent=31 // pred_check
          %p221 = pneg %p52
        $region34: #{head_forward.1} parent=31 // pred_check_branch
          %223 = sbr.rel (%p221) target = $region36
        $region35: #{head_forward.1} parent=31 // pred_region
          %s224 = sand.u32 %s42, 1
          %s225 = scalar_lea.sflag [#allocation3], %s224
          %s226 = sand.u32 %s42, 1
          %s227 = smul.addr %s226, 192
          %s228 = scalar_lea.vmem [#allocation2], %s227
          %s229 = smul.u32 3, %s26
          %s231 = ssub.s32 3072, 3072
          %232 = vsyncadd %s225, %s231
          %s233 = smul.addr %s25, 24
          %s234 = sadd.s32 %s229, %s233
          %s235 = smul.addr %s234, 128
          %s236 = scalar_lea.hbm %s0, %s235
          %s237 = sshll.u32 %s228, 4
          %s238 = int_to_ptr.vmem [resolvable:$true] %s237
          %243 = dma.hbm_to_vmem [thread:$0]  %s236, 3072, %s238, %s225, 384, 384, 24
        $region36: #{head_forward.1} parent=31 // pred_fallthru
          _
      $region32: #{head_forward.1} parent=5 // pred_fallthru
        _
      %p244 = scmp.le.s32.totalorder 1, %s18
      %p245 = scmp.lt.s32.totalorder %s18, 3
      %p246 = pnand %p244, %p245
      %p247 = pneg %p246
      // Predicated region
      $region37: #{head_forward.1} parent=5 // pred_check
        _
      $region38: #{head_forward.1} parent=5 // pred_check_branch
        %249 = sbr.rel (%p246) target = $region40
      $region39: #{head_forward.1} parent=5 // pred_region
        %s250 = ssub.s32 %s18, 1
        %s251 = sand.u32 %s45, 1
        %s252 = scalar_lea.sflag [#allocation3], %s251
        %s253 = sand.u32 %s45, 1
        %s254 = smul.addr %s253, 192
        %s255 = scalar_lea.vmem [#allocation2], %s254
        // Predicated region
        $region41: #{head_forward.1} parent=39 // pred_check
          %p256 = pneg %p58
        $region42: #{head_forward.1} parent=39 // pred_check_branch
          %258 = sbr.rel (%p256) target = $region44
        $region43: #{head_forward.1} parent=39 // pred_region
          %259 = dma.done %s252, 3072
        $region44: #{head_forward.1} parent=39 // pred_fallthru
          _
        // Predicated region
        $region45: #{head_forward.1} parent=39 // pred_check
          %p260 = pneg %p79
        $region46: #{head_forward.1} parent=39 // pred_check_branch
          %262 = sbr.rel (%p260) target = $region48
        $region47: #{head_forward.1} parent=39 // pred_region
          %263 = dma.done [#allocation6], 1024
        $region48: #{head_forward.1} parent=39 // pred_fallthru
          _
        // Predicated region
        $region49: #{head_forward.1} parent=39 // pred_check
          %p264 = pneg %p100
        $region50: #{head_forward.1} parent=39 // pred_check_branch
          %266 = sbr.rel (%p264) target = $region52
        $region51: #{head_forward.1} parent=39 // pred_region
          %267 = dma.done [#allocation6], 512
        $region52: #{head_forward.1} parent=39 // pred_fallthru
          _
        %s268 = sand.u32 %s45, 1
        %s269 = scalar_lea.sflag [#allocation3], %s268
        %s270 = sand.u32 %s45, 1
        %s271 = smul.addr %s270, 192
        %s272 = scalar_lea.vmem [#allocation2], %s271
        %p273 = pneg %p58
        %p274 = pneg %p55
        %p275 = pneg %p79
        %p276 = pneg %p76
        %p277 = pneg %p100
        %p278 = pneg %p97
        %p279 = pneg %p121
        %p280 = pneg %p118
        %p281 = pneg %p142
        %p282 = pneg %p139
        %p283 = pneg %p170
        %p284 = pneg %p167
        %s285 = sand.u32 %s157, 1
        %s286 = scalar_lea.sflag [#allocation4], %s285
        %s287 = sand.u32 %s157, 1
        %s288 = smul.addr %s287, 48
        %s289 = scalar_lea.vmem [#allocation8], %s288
        %s290 = smul.u32 3, %s28
        %s291 = smul.u32 3, %s28
        %v292 = vld [vmem:[#allocation5] sm:$0xff]
        %v293 = vld [vmem:[#allocation5 + $0x8] sm:$0xff]
        %v294 = vld [vmem:[#allocation5 + $0x10] sm:$0xff]
        %v295 = vld [vmem:[#allocation5 + $0x18] sm:$0xff]
        %v296 = vld [vmem:[#allocation5 + $0x20] sm:$0xff]
        %v297 = vld [vmem:[#allocation5 + $0x28] sm:$0xff]
        %v298 = vld [vmem:[#allocation5 + $0x30] sm:$0xff]
        %v299 = vld [vmem:[#allocation5 + $0x38] sm:$0xff]
        %v300 = vld [vmem:[#allocation7] sm:$0xff]
        %v301 = vld [vmem:[#allocation7 + $0x8] sm:$0xff]
        %v302 = vld [vmem:[#allocation7 + $0x10] sm:$0xff]
        %v303 = vld [vmem:[#allocation7 + $0x18] sm:$0xff]
        %v304 = vld [vmem:[%s3] sm:$0xff]
        %v305 = vld [vmem:[%s3 + $0x8] sm:$0xff]
        %v306 = vld [vmem:[%s4] sm:$0xff]
        %v307 = vld [vmem:[%s4 + $0x8] sm:$0xff]
        %v308 = vld [vmem:[%s255] sm:$0xff]
        %v309 = vld [vmem:[%s255 + $0x8] sm:$0xff]
        %v310 = vld [vmem:[%s255 + $0x10] sm:$0xff]
        %v311 = vld [vmem:[%s255 + $0x18] sm:$0xff]
        %v312 = vld [vmem:[%s255 + $0x20] sm:$0xff]
        %v313 = vld [vmem:[%s255 + $0x28] sm:$0xff]
        %v314 = vld [vmem:[%s255 + $0x30] sm:$0xff]
        %v315 = vld [vmem:[%s255 + $0x38] sm:$0xff]
        %v316 = vld [vmem:[%s255 + $0x40] sm:$0xff]
        %v317 = vld [vmem:[%s255 + $0x48] sm:$0xff]
        %v318 = vld [vmem:[%s255 + $0x50] sm:$0xff]
        %v319 = vld [vmem:[%s255 + $0x58] sm:$0xff]
        %v320 = vld [vmem:[%s255 + $0x60] sm:$0xff]
        %v321 = vld [vmem:[%s255 + $0x68] sm:$0xff]
        %v322 = vld [vmem:[%s255 + $0x70] sm:$0xff]
        %v323 = vld [vmem:[%s255 + $0x78] sm:$0xff]
        %v324 = vld [vmem:[%s255 + $0x80] sm:$0xff]
        %v325 = vld [vmem:[%s255 + $0x88] sm:$0xff]
        %v326 = vld [vmem:[%s255 + $0x90] sm:$0xff]
        %v327 = vld [vmem:[%s255 + $0x98] sm:$0xff]
        %v328 = vld [vmem:[%s255 + $0xa0] sm:$0xff]
        %v329 = vld [vmem:[%s255 + $0xa8] sm:$0xff]
        %v330 = vld [vmem:[%s255 + $0xb0] sm:$0xff]
        %v331 = vld [vmem:[%s255 + $0xb8] sm:$0xff]
        %vm332 = vcmask 523264
        %v334 = vsel %vm332, %v292, 0
        %v337 = vsel %vm332, %v293, 0
        %v340 = vsel %vm332, %v294, 0
        %v343 = vsel %vm332, %v295, 0
        %v346 = vsel %vm332, %v296, 0
        %v349 = vsel %vm332, %v297, 0
        %v352 = vsel %vm332, %v298, 0
        %v355 = vsel %vm332, %v299, 0
        %357 = vmatprep.subr.mxu0 %v309
        %358 = vmatpush1.msra.mxu0 %v308
        %359 = vmatprep.subr.mxu0 %v312
        %360 = vmatpush1.msra.mxu0 %v311
        %361 = vmatprep.subr.mxu0 %v315
        %362 = vmatpush1.msra.mxu0 %v314
        %363 = vmatprep.subr.mxu0 %v318
        %364 = vmatpush1.msra.mxu0 %v317
        %365 = vmatprep.subr.mxu0 %v321
        %366 = vmatpush1.msra.mxu0 %v320
        %367 = vmatprep.subr.mxu0 %v324
        %368 = vmatpush1.msra.mxu0 %v323
        %369 = vmatprep.subr.mxu0 %v327
        %370 = vmatpush1.msra.mxu0 %v326
        %371 = vmatprep.subr.mxu0 %v330
        %372 = vmatpush1.msra.mxu0 %v329
        %373 = vmatprep.subr.mxu0 0.0
        %374 = vmatpush1.msra.mxu0 0.0
        %375 = vmatprep.subr.mxu0 0.0
        %376 = vmatpush1.msra.mxu0 0.0
        %377 = vmatprep.subr.mxu0 0.0
        %378 = vmatpush1.msra.mxu0 0.0
        %379 = vmatprep.subr.mxu0 0.0
        %380 = vmatpush1.msra.mxu0 0.0
        %381 = vmatprep.subr.mxu0 0.0
        %382 = vmatpush1.msra.mxu0 0.0
        %383 = vmatprep.subr.mxu0 0.0
        %384 = vmatpush1.msra.mxu0 0.0
        %385 = vmatprep.subr.mxu0 0.0
        %386 = vmatpush1.msra.mxu0 0.0
        %387 = vmatprep.subr.mxu0 0.0
        %388 = vmatpush1.msra.mxu0 0.0
        %389 = vmatprep.subr.mxu0 0.0
        %390 = vmatpush1.msra.mxu0 0.0
        %391 = vmatprep.subr.mxu0 0.0
        %392 = vmatpush1.msra.mxu0 0.0
        %393 = vmatprep.subr.mxu0 0.0
        %394 = vmatpush1.msra.mxu0 0.0
        %395 = vmatprep.subr.mxu0 0.0
        %396 = vmatpush1.msra.mxu0 0.0
        %397 = vmatprep.subr.mxu0 0.0
        %398 = vmatpush1.msra.mxu0 0.0
        %399 = vmatprep.subr.mxu0 0.0
        %400 = vmatpush1.msra.mxu0 0.0
        %401 = vmatprep.subr.mxu0 0.0
        %402 = vmatpush1.msra.mxu0 0.0
        %403 = vmatprep.subr.mxu0 0.0
        %404 = vmatpush1.msra.mxu0 0.0
        %405 = vmatprep.subr.mxu0 0.0
        %406 = vmatpush1.msra.mxu0 0.0
        %407 = vmatprep.subr.mxu0 0.0
        %408 = vmatpush1.msra.mxu0 0.0
        %409 = vmatprep.subr.mxu0 0.0
        %410 = vmatpush1.msra.mxu0 0.0
        %411 = vmatprep.subr.mxu0 0.0
        %412 = vmatpush1.msra.mxu0 0.0
        %413 = vmatprep.subr.mxu0 0.0
        %414 = vmatpush1.msra.mxu0 0.0
        %415 = vmatprep.subr.mxu0 0.0
        %416 = vmatpush1.msra.mxu0 0.0
        %417 = vmatprep.subr.mxu0 0.0
        %418 = vmatpush1.msra.mxu0 0.0
        %419 = vmatprep.subr.mxu0 0.0
        %420 = vmatpush1.msra.mxu0 0.0
        %421 = vmatprep.mubr.f32.mxu0 0.0
        %422 = vmatmul.mubr.f32.gmra.mrb[0].mxu0 %v334
        %v423 = vpop.f32.mrb[0].mxu0
        %v424 = vadd.f32 0.0, %v423
        %v425 = vpop.f32.mrb[0].mxu0
        %v426 = vadd.f32 0.0, %v425
        %427 = vmatprep.mubr.f32.mxu0 0.0
        %428 = vmatmul.mubr.f32.gmra.mrb[0].mxu0 %v337
        %v429 = vpop.f32.mrb[0].mxu0
        %v430 = vadd.f32 0.0, %v429
        %v431 = vpop.f32.mrb[0].mxu0
        %v432 = vadd.f32 0.0, %v431
        %433 = vmatprep.mubr.f32.mxu0 0.0
        %434 = vmatmul.mubr.f32.gmra.mrb[0].mxu0 %v340
        %v435 = vpop.f32.mrb[0].mxu0
        %v436 = vadd.f32 0.0, %v435
        %v437 = vpop.f32.mrb[0].mxu0
        %v438 = vadd.f32 0.0, %v437
        %439 = vmatprep.mubr.f32.mxu0 0.0
        %440 = vmatmul.mubr.f32.gmra.mrb[0].mxu0 %v343
        %v441 = vpop.f32.mrb[0].mxu0
        %v442 = vadd.f32 0.0, %v441
        %v443 = vpop.f32.mrb[0].mxu0
        %v444 = vadd.f32 0.0, %v443
        %445 = vmatprep.mubr.f32.mxu0 0.0
        %446 = vmatmul.mubr.f32.gmra.mrb[0].mxu0 %v346
        %v447 = vpop.f32.mrb[0].mxu0
        %v448 = vadd.f32 0.0, %v447
        %v449 = vpop.f32.mrb[0].mxu0
        %v450 = vadd.f32 0.0, %v449
        %451 = vmatprep.mubr.f32.mxu0 0.0
        %452 = vmatmul.mubr.f32.gmra.mrb[0].mxu0 %v349
        %v453 = vpop.f32.mrb[0].mxu0
        %v454 = vadd.f32 0.0, %v453
        %v455 = vpop.f32.mrb[0].mxu0
        %v456 = vadd.f32 0.0, %v455
        %457 = vmatprep.mubr.f32.mxu0 0.0
        %458 = vmatmul.mubr.f32.gmra.mrb[0].mxu0 %v352
        %v459 = vpop.f32.mrb[0].mxu0
        %v460 = vadd.f32 0.0, %v459
        %v461 = vpop.f32.mrb[0].mxu0
        %v462 = vadd.f32 0.0, %v461
        %463 = vmatprep.mubr.f32.mxu0 0.0
        %464 = vmatmul.mubr.f32.gmra.mrb[0].mxu0 %v355
        %v465 = vpop.f32.mrb[0].mxu0
        %v466 = vadd.f32 0.0, %v465
        %v467 = vpop.f32.mrb[0].mxu0
        %v468 = vadd.f32 0.0, %v467
        %469 = vdwg.mxu0
        %470 = vmatprep.subr.mxu0 0.0
        %471 = vmatpush1.msra.mxu0 %v310
        %472 = vmatprep.subr.mxu0 0.0
        %473 = vmatpush1.msra.mxu0 %v313
        %474 = vmatprep.subr.mxu0 0.0
        %475 = vmatpush1.msra.mxu0 %v316
        %476 = vmatprep.subr.mxu0 0.0
        %477 = vmatpush1.msra.mxu0 %v319
        %478 = vmatprep.subr.mxu0 0.0
        %479 = vmatpush1.msra.mxu0 %v322
        %480 = vmatprep.subr.mxu0 0.0
        %481 = vmatpush1.msra.mxu0 %v325
        %482 = vmatprep.subr.mxu0 0.0
        %483 = vmatpush1.msra.mxu0 %v328
        %484 = vmatprep.subr.mxu0 0.0
        %485 = vmatpush1.msra.mxu0 %v331
        %486 = vmatprep.subr.mxu0 0.0
        %487 = vmatpush1.msra.mxu0 0.0
        %488 = vmatprep.subr.mxu0 0.0
        %489 = vmatpush1.msra.mxu0 0.0
        %490 = vmatprep.subr.mxu0 0.0
        %491 = vmatpush1.msra.mxu0 0.0
        %492 = vmatprep.subr.mxu0 0.0
        %493 = vmatpush1.msra.mxu0 0.0
        %494 = vmatprep.subr.mxu0 0.0
        %495 = vmatpush1.msra.mxu0 0.0
        %496 = vmatprep.subr.mxu0 0.0
        %497 = vmatpush1.msra.mxu0 0.0
        %498 = vmatprep.subr.mxu0 0.0
        %499 = vmatpush1.msra.mxu0 0.0
        %500 = vmatprep.subr.mxu0 0.0
        %501 = vmatpush1.msra.mxu0 0.0
        %502 = vmatprep.subr.mxu0 0.0
        %503 = vmatpush1.msra.mxu0 0.0
        %504 = vmatprep.subr.mxu0 0.0
        %505 = vmatpush1.msra.mxu0 0.0
        %506 = vmatprep.subr.mxu0 0.0
        %507 = vmatpush1.msra.mxu0 0.0
        %508 = vmatprep.subr.mxu0 0.0
        %509 = vmatpush1.msra.mxu0 0.0
        %510 = vmatprep.subr.mxu0 0.0
        %511 = vmatpush1.msra.mxu0 0.0
        %512 = vmatprep.subr.mxu0 0.0
        %513 = vmatpush1.msra.mxu0 0.0
        %514 = vmatprep.subr.mxu0 0.0
        %515 = vmatpush1.msra.mxu0 0.0
        %516 = vmatprep.subr.mxu0 0.0
        %517 = vmatpush1.msra.mxu0 0.0
        %518 = vmatprep.subr.mxu0 0.0
        %519 = vmatpush1.msra.mxu0 0.0
        %520 = vmatprep.subr.mxu0 0.0
        %521 = vmatpush1.msra.mxu0 0.0
        %522 = vmatprep.subr.mxu0 0.0
        %523 = vmatpush1.msra.mxu0 0.0
        %524 = vmatprep.subr.mxu0 0.0
        %525 = vmatpush1.msra.mxu0 0.0
        %526 = vmatprep.subr.mxu0 0.0
        %527 = vmatpush1.msra.mxu0 0.0
        %528 = vmatprep.subr.mxu0 0.0
        %529 = vmatpush1.msra.mxu0 0.0
        %530 = vmatprep.subr.mxu0 0.0
        %531 = vmatpush1.msra.mxu0 0.0
        %532 = vmatprep.subr.mxu0 0.0
        %533 = vmatpush1.msra.mxu0 0.0
        %534 = vmatprep.mubr.f32.mxu0 0.0
        %535 = vmatmul.mubr.f32.gmra.mrb[0].mxu0 %v334
        %v536 = vpop.f32.mrb[0].mxu0
        %v537 = vadd.f32 0.0, %v536
        %v538 = vpop.f32.mrb[0].mxu0
        %539 = vmatprep.mubr.f32.mxu0 0.0
        %540 = vmatmul.mubr.f32.gmra.mrb[0].mxu0 %v337
        %v541 = vpop.f32.mrb[0].mxu0
        %v542 = vadd.f32 0.0, %v541
        %v543 = vpop.f32.mrb[0].mxu0
        %544 = vmatprep.mubr.f32.mxu0 0.0
        %545 = vmatmul.mubr.f32.gmra.mrb[0].mxu0 %v340
        %v546 = vpop.f32.mrb[0].mxu0
        %v547 = vadd.f32 0.0, %v546
        %v548 = vpop.f32.mrb[0].mxu0
        %549 = vmatprep.mubr.f32.mxu0 0.0
        %550 = vmatmul.mubr.f32.gmra.mrb[0].mxu0 %v343
        %v551 = vpop.f32.mrb[0].mxu0
        %v552 = vadd.f32 0.0, %v551
        %v553 = vpop.f32.mrb[0].mxu0
        %554 = vmatprep.mubr.f32.mxu0 0.0
        %555 = vmatmul.mubr.f32.gmra.mrb[0].mxu0 %v346
        %v556 = vpop.f32.mrb[0].mxu0
        %v557 = vadd.f32 0.0, %v556
        %v558 = vpop.f32.mrb[0].mxu0
        %559 = vmatprep.mubr.f32.mxu0 0.0
        %560 = vmatmul.mubr.f32.gmra.mrb[0].mxu0 %v349
        %v561 = vpop.f32.mrb[0].mxu0
        %v562 = vadd.f32 0.0, %v561
        %v563 = vpop.f32.mrb[0].mxu0
        %564 = vmatprep.mubr.f32.mxu0 0.0
        %565 = vmatmul.mubr.f32.gmra.mrb[0].mxu0 %v352
        %v566 = vpop.f32.mrb[0].mxu0
        %v567 = vadd.f32 0.0, %v566
        %v568 = vpop.f32.mrb[0].mxu0
        %569 = vmatprep.mubr.f32.mxu0 0.0
        %570 = vmatmul.mubr.f32.gmra.mrb[0].mxu0 %v355
        %v571 = vpop.f32.mrb[0].mxu0
        %v572 = vadd.f32 0.0, %v571
        %v573 = vpop.f32.mrb[0].mxu0
        %574 = vdwg.mxu0
        %v575 = vmax.f32 %v424, 0.0
        %v576 = vmax.f32 %v426, 0.0
        %v577 = vmax.f32 %v537, 0.0
        %v578 = vmax.f32 %v430, 0.0
        %v579 = vmax.f32 %v432, 0.0
        %v580 = vmax.f32 %v542, 0.0
        %v581 = vmax.f32 %v436, 0.0
        %v582 = vmax.f32 %v438, 0.0
        %v583 = vmax.f32 %v547, 0.0
        %v584 = vmax.f32 %v442, 0.0
        %v585 = vmax.f32 %v444, 0.0
        %v586 = vmax.f32 %v552, 0.0
        %v587 = vmax.f32 %v448, 0.0
        %v588 = vmax.f32 %v450, 0.0
        %v589 = vmax.f32 %v557, 0.0
        %v590 = vmax.f32 %v454, 0.0
        %v591 = vmax.f32 %v456, 0.0
        %v592 = vmax.f32 %v562, 0.0
        %v593 = vmax.f32 %v460, 0.0
        %v594 = vmax.f32 %v462, 0.0
        %v595 = vmax.f32 %v567, 0.0
        %v596 = vmax.f32 %v466, 0.0
        %v597 = vmax.f32 %v468, 0.0
        %v598 = vmax.f32 %v572, 0.0
        %v600 = vsel %vm332, %v300, 0
        %v603 = vsel %vm332, %v301, 0
        %v606 = vsel %vm332, %v302, 0
        %v609 = vsel %vm332, %v303, 0
        %611 = vmatprep.subr.mxu0 %v576
        %612 = vmatpush1.msra.mxu0 %v575
        %613 = vmatprep.subr.mxu0 %v579
        %614 = vmatpush1.msra.mxu0 %v578
        %615 = vmatprep.subr.mxu0 %v582
        %616 = vmatpush1.msra.mxu0 %v581
        %617 = vmatprep.subr.mxu0 %v585
        %618 = vmatpush1.msra.mxu0 %v584
        %619 = vmatprep.subr.mxu0 %v588
        %620 = vmatpush1.msra.mxu0 %v587
        %621 = vmatprep.subr.mxu0 %v591
        %622 = vmatpush1.msra.mxu0 %v590
        %623 = vmatprep.subr.mxu0 %v594
        %624 = vmatpush1.msra.mxu0 %v593
        %625 = vmatprep.subr.mxu0 %v597
        %626 = vmatpush1.msra.mxu0 %v596
        %627 = vmatprep.subr.mxu0 0.0
        %628 = vmatpush1.msra.mxu0 0.0
        %629 = vmatprep.subr.mxu0 0.0
        %630 = vmatpush1.msra.mxu0 0.0
        %631 = vmatprep.subr.mxu0 0.0
        %632 = vmatpush1.msra.mxu0 0.0
        %633 = vmatprep.subr.mxu0 0.0
        %634 = vmatpush1.msra.mxu0 0.0
        %635 = vmatprep.subr.mxu0 0.0
        %636 = vmatpush1.msra.mxu0 0.0
        %637 = vmatprep.subr.mxu0 0.0
        %638 = vmatpush1.msra.mxu0 0.0
        %639 = vmatprep.subr.mxu0 0.0
        %640 = vmatpush1.msra.mxu0 0.0
        %641 = vmatprep.subr.mxu0 0.0
        %642 = vmatpush1.msra.mxu0 0.0
        %643 = vmatprep.subr.mxu0 0.0
        %644 = vmatpush1.msra.mxu0 0.0
        %645 = vmatprep.subr.mxu0 0.0
        %646 = vmatpush1.msra.mxu0 0.0
        %647 = vmatprep.subr.mxu0 0.0
        %648 = vmatpush1.msra.mxu0 0.0
        %649 = vmatprep.subr.mxu0 0.0
        %650 = vmatpush1.msra.mxu0 0.0
        %651 = vmatprep.subr.mxu0 0.0
        %652 = vmatpush1.msra.mxu0 0.0
        %653 = vmatprep.subr.mxu0 0.0
        %654 = vmatpush1.msra.mxu0 0.0
        %655 = vmatprep.subr.mxu0 0.0
        %656 = vmatpush1.msra.mxu0 0.0
        %657 = vmatprep.subr.mxu0 0.0
        %658 = vmatpush1.msra.mxu0 0.0
        %659 = vmatprep.subr.mxu0 0.0
        %660 = vmatpush1.msra.mxu0 0.0
        %661 = vmatprep.subr.mxu0 0.0
        %662 = vmatpush1.msra.mxu0 0.0
        %663 = vmatprep.subr.mxu0 0.0
        %664 = vmatpush1.msra.mxu0 0.0
        %665 = vmatprep.subr.mxu0 0.0
        %666 = vmatpush1.msra.mxu0 0.0
        %667 = vmatprep.subr.mxu0 0.0
        %668 = vmatpush1.msra.mxu0 0.0
        %669 = vmatprep.subr.mxu0 0.0
        %670 = vmatpush1.msra.mxu0 0.0
        %671 = vmatprep.subr.mxu0 0.0
        %672 = vmatpush1.msra.mxu0 0.0
        %673 = vmatprep.subr.mxu0 0.0
        %674 = vmatpush1.msra.mxu0 0.0
        %675 = vmatprep.mubr.f32.mxu0 0.0
        %676 = vmatmul.mubr.f32.gmra.mrb[0].mxu0 %v600
        %v677 = vpop.f32.mrb[0].mxu0
        %v678 = vadd.f32 0.0, %v677
        %v679 = vpop.f32.mrb[0].mxu0
        %v680 = vadd.f32 0.0, %v679
        %681 = vmatprep.mubr.f32.mxu0 0.0
        %682 = vmatmul.mubr.f32.gmra.mrb[0].mxu0 %v603
        %v683 = vpop.f32.mrb[0].mxu0
        %v684 = vadd.f32 0.0, %v683
        %v685 = vpop.f32.mrb[0].mxu0
        %v686 = vadd.f32 0.0, %v685
        %687 = vmatprep.mubr.f32.mxu0 0.0
        %688 = vmatmul.mubr.f32.gmra.mrb[0].mxu0 %v606
        %v689 = vpop.f32.mrb[0].mxu0
        %v690 = vadd.f32 0.0, %v689
        %v691 = vpop.f32.mrb[0].mxu0
        %v692 = vadd.f32 0.0, %v691
        %693 = vmatprep.mubr.f32.mxu0 0.0
        %694 = vmatmul.mubr.f32.gmra.mrb[0].mxu0 %v609
        %v695 = vpop.f32.mrb[0].mxu0
        %v696 = vadd.f32 0.0, %v695
        %v697 = vpop.f32.mrb[0].mxu0
        %v698 = vadd.f32 0.0, %v697
        %699 = vdwg.mxu0
        %700 = vmatprep.subr.mxu0 0.0
        %701 = vmatpush1.msra.mxu0 %v577
        %702 = vmatprep.subr.mxu0 0.0
        %703 = vmatpush1.msra.mxu0 %v580
        %704 = vmatprep.subr.mxu0 0.0
        %705 = vmatpush1.msra.mxu0 %v583
        %706 = vmatprep.subr.mxu0 0.0
        %707 = vmatpush1.msra.mxu0 %v586
        %708 = vmatprep.subr.mxu0 0.0
        %709 = vmatpush1.msra.mxu0 %v589
        %710 = vmatprep.subr.mxu0 0.0
        %711 = vmatpush1.msra.mxu0 %v592
        %712 = vmatprep.subr.mxu0 0.0
        %713 = vmatpush1.msra.mxu0 %v595
        %714 = vmatprep.subr.mxu0 0.0
        %715 = vmatpush1.msra.mxu0 %v598
        %716 = vmatprep.subr.mxu0 0.0
        %717 = vmatpush1.msra.mxu0 0.0
        %718 = vmatprep.subr.mxu0 0.0
        %719 = vmatpush1.msra.mxu0 0.0
        %720 = vmatprep.subr.mxu0 0.0
        %721 = vmatpush1.msra.mxu0 0.0
        %722 = vmatprep.subr.mxu0 0.0
        %723 = vmatpush1.msra.mxu0 0.0
        %724 = vmatprep.subr.mxu0 0.0
        %725 = vmatpush1.msra.mxu0 0.0
        %726 = vmatprep.subr.mxu0 0.0
        %727 = vmatpush1.msra.mxu0 0.0
        %728 = vmatprep.subr.mxu0 0.0
        %729 = vmatpush1.msra.mxu0 0.0
        %730 = vmatprep.subr.mxu0 0.0
        %731 = vmatpush1.msra.mxu0 0.0
        %732 = vmatprep.subr.mxu0 0.0
        %733 = vmatpush1.msra.mxu0 0.0
        %734 = vmatprep.subr.mxu0 0.0
        %735 = vmatpush1.msra.mxu0 0.0
        %736 = vmatprep.subr.mxu0 0.0
        %737 = vmatpush1.msra.mxu0 0.0
        %738 = vmatprep.subr.mxu0 0.0
        %739 = vmatpush1.msra.mxu0 0.0
        %740 = vmatprep.subr.mxu0 0.0
        %741 = vmatpush1.msra.mxu0 0.0
        %742 = vmatprep.subr.mxu0 0.0
        %743 = vmatpush1.msra.mxu0 0.0
        %744 = vmatprep.subr.mxu0 0.0
        %745 = vmatpush1.msra.mxu0 0.0
        %746 = vmatprep.subr.mxu0 0.0
        %747 = vmatpush1.msra.mxu0 0.0
        %748 = vmatprep.subr.mxu0 0.0
        %749 = vmatpush1.msra.mxu0 0.0
        %750 = vmatprep.subr.mxu0 0.0
        %751 = vmatpush1.msra.mxu0 0.0
        %752 = vmatprep.subr.mxu0 0.0
        %753 = vmatpush1.msra.mxu0 0.0
        %754 = vmatprep.subr.mxu0 0.0
        %755 = vmatpush1.msra.mxu0 0.0
        %756 = vmatprep.subr.mxu0 0.0
        %757 = vmatpush1.msra.mxu0 0.0
        %758 = vmatprep.subr.mxu0 0.0
        %759 = vmatpush1.msra.mxu0 0.0
        %760 = vmatprep.subr.mxu0 0.0
        %761 = vmatpush1.msra.mxu0 0.0
        %762 = vmatprep.subr.mxu0 0.0
        %763 = vmatpush1.msra.mxu0 0.0
        %764 = vmatprep.mubr.f32.mxu0 0.0
        %765 = vmatmul.mubr.f32.gmra.mrb[0].mxu0 %v600
        %v766 = vpop.f32.mrb[0].mxu0
        %v767 = vadd.f32 0.0, %v766
        %v768 = vpop.f32.mrb[0].mxu0
        %769 = vmatprep.mubr.f32.mxu0 0.0
        %770 = vmatmul.mubr.f32.gmra.mrb[0].mxu0 %v603
        %v771 = vpop.f32.mrb[0].mxu0
        %v772 = vadd.f32 0.0, %v771
        %v773 = vpop.f32.mrb[0].mxu0
        %774 = vmatprep.mubr.f32.mxu0 0.0
        %775 = vmatmul.mubr.f32.gmra.mrb[0].mxu0 %v606
        %v776 = vpop.f32.mrb[0].mxu0
        %v777 = vadd.f32 0.0, %v776
        %v778 = vpop.f32.mrb[0].mxu0
        %779 = vmatprep.mubr.f32.mxu0 0.0
        %780 = vmatmul.mubr.f32.gmra.mrb[0].mxu0 %v609
        %v781 = vpop.f32.mrb[0].mxu0
        %v782 = vadd.f32 0.0, %v781
        %v783 = vpop.f32.mrb[0].mxu0
        %784 = vdwg.mxu0
        %v785 = vmax.f32 %v678, 0.0
        %v786 = vmax.f32 %v680, 0.0
        %v787 = vmax.f32 %v767, 0.0
        %v788 = vmax.f32 %v684, 0.0
        %v789 = vmax.f32 %v686, 0.0
        %v790 = vmax.f32 %v772, 0.0
        %v791 = vmax.f32 %v690, 0.0
        %v792 = vmax.f32 %v692, 0.0
        %v793 = vmax.f32 %v777, 0.0
        %v794 = vmax.f32 %v696, 0.0
        %v795 = vmax.f32 %v698, 0.0
        %v796 = vmax.f32 %v782, 0.0
        %798 = vset.pattern.permute.xlu0 0
        %799 = vperm.xlu0 %798, %v306
        %v800 = vpop.permute.xlu0 %799
        %803 = vset.pattern.permute.xlu0 0
        %804 = vperm.xlu0 %803, %v307
        %v805 = vpop.permute.xlu0 %804
        %vm807 = vcmask 261120
        %v809 = vsel %vm807, %v304, 0
        %v812 = vsel %vm807, %v305, 0
        %814 = vmatprep.subr.mxu0 %v786
        %815 = vmatpush1.msra.mxu0 %v785
        %816 = vmatprep.subr.mxu0 %v789
        %817 = vmatpush1.msra.mxu0 %v788
        %818 = vmatprep.subr.mxu0 %v792
        %819 = vmatpush1.msra.mxu0 %v791
        %820 = vmatprep.subr.mxu0 %v795
        %821 = vmatpush1.msra.mxu0 %v794
        %822 = vmatprep.subr.mxu0 0.0
        %823 = vmatpush1.msra.mxu0 0.0
        %824 = vmatprep.subr.mxu0 0.0
        %825 = vmatpush1.msra.mxu0 0.0
        %826 = vmatprep.subr.mxu0 0.0
        %827 = vmatpush1.msra.mxu0 0.0
        %828 = vmatprep.subr.mxu0 0.0
        %829 = vmatpush1.msra.mxu0 0.0
        %830 = vmatprep.subr.mxu0 0.0
        %831 = vmatpush1.msra.mxu0 0.0
        %832 = vmatprep.subr.mxu0 0.0
        %833 = vmatpush1.msra.mxu0 0.0
        %834 = vmatprep.subr.mxu0 0.0
        %835 = vmatpush1.msra.mxu0 0.0
        %836 = vmatprep.subr.mxu0 0.0
        %837 = vmatpush1.msra.mxu0 0.0
        %838 = vmatprep.subr.mxu0 0.0
        %839 = vmatpush1.msra.mxu0 0.0
        %840 = vmatprep.subr.mxu0 0.0
        %841 = vmatpush1.msra.mxu0 0.0
        %842 = vmatprep.subr.mxu0 0.0
        %843 = vmatpush1.msra.mxu0 0.0
        %844 = vmatprep.subr.mxu0 0.0
        %845 = vmatpush1.msra.mxu0 0.0
        %846 = vmatprep.subr.mxu0 0.0
        %847 = vmatpush1.msra.mxu0 0.0
        %848 = vmatprep.subr.mxu0 0.0
        %849 = vmatpush1.msra.mxu0 0.0
        %850 = vmatprep.subr.mxu0 0.0
        %851 = vmatpush1.msra.mxu0 0.0
        %852 = vmatprep.subr.mxu0 0.0
        %853 = vmatpush1.msra.mxu0 0.0
        %854 = vmatprep.subr.mxu0 0.0
        %855 = vmatpush1.msra.mxu0 0.0
        %856 = vmatprep.subr.mxu0 0.0
        %857 = vmatpush1.msra.mxu0 0.0
        %858 = vmatprep.subr.mxu0 0.0
        %859 = vmatpush1.msra.mxu0 0.0
        %860 = vmatprep.subr.mxu0 0.0
        %861 = vmatpush1.msra.mxu0 0.0
        %862 = vmatprep.subr.mxu0 0.0
        %863 = vmatpush1.msra.mxu0 0.0
        %864 = vmatprep.subr.mxu0 0.0
        %865 = vmatpush1.msra.mxu0 0.0
        %866 = vmatprep.subr.mxu0 0.0
        %867 = vmatpush1.msra.mxu0 0.0
        %868 = vmatprep.subr.mxu0 0.0
        %869 = vmatpush1.msra.mxu0 0.0
        %870 = vmatprep.subr.mxu0 0.0
        %871 = vmatpush1.msra.mxu0 0.0
        %872 = vmatprep.subr.mxu0 0.0
        %873 = vmatpush1.msra.mxu0 0.0
        %874 = vmatprep.subr.mxu0 0.0
        %875 = vmatpush1.msra.mxu0 0.0
        %876 = vmatprep.subr.mxu0 0.0
        %877 = vmatpush1.msra.mxu0 0.0
        %878 = vmatprep.mubr.f32.mxu0 0.0
        %879 = vmatmul.mubr.f32.gmra.mrb[0].mxu0 %v809
        %v880 = vpop.f32.mrb[0].mxu0
        %v881 = vadd.f32 %v800, %v880
        %v882 = vpop.f32.mrb[0].mxu0
        %v883 = vadd.f32 %v800, %v882
        %884 = vmatprep.mubr.f32.mxu0 0.0
        %885 = vmatmul.mubr.f32.gmra.mrb[0].mxu0 %v812
        %v886 = vpop.f32.mrb[0].mxu0
        %v887 = vadd.f32 %v805, %v886
        %v888 = vpop.f32.mrb[0].mxu0
        %v889 = vadd.f32 %v805, %v888
        %890 = vdwg.mxu0
        %891 = vmatprep.subr.mxu0 0.0
        %892 = vmatpush1.msra.mxu0 %v787
        %893 = vmatprep.subr.mxu0 0.0
        %894 = vmatpush1.msra.mxu0 %v790
        %895 = vmatprep.subr.mxu0 0.0
        %896 = vmatpush1.msra.mxu0 %v793
        %897 = vmatprep.subr.mxu0 0.0
        %898 = vmatpush1.msra.mxu0 %v796
        %899 = vmatprep.subr.mxu0 0.0
        %900 = vmatpush1.msra.mxu0 0.0
        %901 = vmatprep.subr.mxu0 0.0
        %902 = vmatpush1.msra.mxu0 0.0
        %903 = vmatprep.subr.mxu0 0.0
        %904 = vmatpush1.msra.mxu0 0.0
        %905 = vmatprep.subr.mxu0 0.0
        %906 = vmatpush1.msra.mxu0 0.0
        %907 = vmatprep.subr.mxu0 0.0
        %908 = vmatpush1.msra.mxu0 0.0
        %909 = vmatprep.subr.mxu0 0.0
        %910 = vmatpush1.msra.mxu0 0.0
        %911 = vmatprep.subr.mxu0 0.0
        %912 = vmatpush1.msra.mxu0 0.0
        %913 = vmatprep.subr.mxu0 0.0
        %914 = vmatpush1.msra.mxu0 0.0
        %915 = vmatprep.subr.mxu0 0.0
        %916 = vmatpush1.msra.mxu0 0.0
        %917 = vmatprep.subr.mxu0 0.0
        %918 = vmatpush1.msra.mxu0 0.0
        %919 = vmatprep.subr.mxu0 0.0
        %920 = vmatpush1.msra.mxu0 0.0
        %921 = vmatprep.subr.mxu0 0.0
        %922 = vmatpush1.msra.mxu0 0.0
        %923 = vmatprep.subr.mxu0 0.0
        %924 = vmatpush1.msra.mxu0 0.0
        %925 = vmatprep.subr.mxu0 0.0
        %926 = vmatpush1.msra.mxu0 0.0
        %927 = vmatprep.subr.mxu0 0.0
        %928 = vmatpush1.msra.mxu0 0.0
        %929 = vmatprep.subr.mxu0 0.0
        %930 = vmatpush1.msra.mxu0 0.0
        %931 = vmatprep.subr.mxu0 0.0
        %932 = vmatpush1.msra.mxu0 0.0
        %933 = vmatprep.subr.mxu0 0.0
        %934 = vmatpush1.msra.mxu0 0.0
        %935 = vmatprep.subr.mxu0 0.0
        %936 = vmatpush1.msra.mxu0 0.0
        %937 = vmatprep.subr.mxu0 0.0
        %938 = vmatpush1.msra.mxu0 0.0
        %939 = vmatprep.subr.mxu0 0.0
        %940 = vmatpush1.msra.mxu0 0.0
        %941 = vmatprep.subr.mxu0 0.0
        %942 = vmatpush1.msra.mxu0 0.0
        %943 = vmatprep.subr.mxu0 0.0
        %944 = vmatpush1.msra.mxu0 0.0
        %945 = vmatprep.subr.mxu0 0.0
        %946 = vmatpush1.msra.mxu0 0.0
        %947 = vmatprep.subr.mxu0 0.0
        %948 = vmatpush1.msra.mxu0 0.0
        %949 = vmatprep.subr.mxu0 0.0
        %950 = vmatpush1.msra.mxu0 0.0
        %951 = vmatprep.subr.mxu0 0.0
        %952 = vmatpush1.msra.mxu0 0.0
        %953 = vmatprep.subr.mxu0 0.0
        %954 = vmatpush1.msra.mxu0 0.0
        %955 = vmatprep.mubr.f32.mxu0 0.0
        %956 = vmatmul.mubr.f32.gmra.mrb[0].mxu0 %v809
        %v957 = vpop.f32.mrb[0].mxu0
        %v958 = vadd.f32 %v800, %v957
        %v959 = vpop.f32.mrb[0].mxu0
        %960 = vmatprep.mubr.f32.mxu0 0.0
        %961 = vmatmul.mubr.f32.gmra.mrb[0].mxu0 %v812
        %v962 = vpop.f32.mrb[0].mxu0
        %v963 = vadd.f32 %v805, %v962
        %v964 = vpop.f32.mrb[0].mxu0
        %965 = vdwg.mxu0
        %966 = vst [vmem:[%s289] sm:$0xff] %v881
        %967 = vst [vmem:[%s289 + $0x8] sm:$0xff] %v883
        %968 = vst [vmem:[%s289 + $0x10] sm:$0xff] %v958
        %969 = vst [vmem:[%s289 + $0x18] sm:$0xff] %v887
        %970 = vst [vmem:[%s289 + $0x20] sm:$0xff] %v889
        %971 = vst [vmem:[%s289 + $0x28] sm:$0xff] %v963
        %s972 = sand.u32 %s157, 1
        %s973 = scalar_lea.sflag [#allocation4], %s972
        %s974 = sand.u32 %s157, 1
        %s975 = smul.addr %s974, 48
        %s976 = scalar_lea.vmem [#allocation8], %s975
        // Predicated region
        $region53: #{head_forward.1} parent=39 // pred_check
          %p977 = pneg %p167
        $region54: #{head_forward.1} parent=39 // pred_check_branch
          %979 = sbr.rel (%p977) target = $region56
        $region55: #{head_forward.1} parent=39 // pred_region
          %s980 = smul.u32 3, %s28
          %s982 = ssub.s32 768, 768
          %983 = vsyncadd %s973, %s982
          %s984 = smul.addr %s27, 6
          %s985 = sadd.s32 %s980, %s984
          %s986 = smul.addr %s985, 128
          %s987 = scalar_lea.hbm %s5, %s986
          %s988 = sshll.u32 %s976, 4
          %s989 = int_to_ptr.vmem [resolvable:$true] %s988
          %994 = dma.vmem_to_hbm [thread:$0]  %s989, 768, %s987, %s973, 384, 384, 24
        $region56: #{head_forward.1} parent=39 // pred_fallthru
          _
      $region40: #{head_forward.1} parent=5 // pred_fallthru
        _
      %p995 = scmp.le.s32.totalorder 2, %s18
      // Predicated region
      $region57: #{head_forward.1} parent=5 // pred_check
        %p996 = pneg %p995
      $region58: #{head_forward.1} parent=5 // pred_check_branch
        %998 = sbr.rel (%p996) target = $region60
      $region59: #{head_forward.1} parent=5 // pred_region
        %s999 = ssub.s32 %s18, 2
        // Predicated region
        $region61: #{head_forward.1} parent=59 // pred_check
          %p1000 = pneg %p173
        $region62: #{head_forward.1} parent=59 // pred_check_branch
          %1002 = sbr.rel (%p1000) target = $region64
        $region63: #{head_forward.1} parent=59 // pred_region
          %s1003 = sand.u32 %s158, 1
          %s1004 = scalar_lea.sflag [#allocation4], %s1003
          %s1005 = sand.u32 %s158, 1
          %s1006 = smul.addr %s1005, 48
          %s1007 = scalar_lea.vmem [#allocation8], %s1006
          %1008 = dma.done %s1004, 768
        $region64: #{head_forward.1} parent=59 // pred_fallthru
          _
      $region60: #{head_forward.1} parent=5 // pred_fallthru
        _
    $region6: #{head_forward.1} parent=1 // loop_footer
      %s22 = sadd.s32 1, %s18
    $region7: #{head_forward.1} parent=1 // loop_footer_branch
      %17 = sbr.rel target = $region3
    $region8: #{head_forward.1} parent=1 // loop_exit
      _
    %1009 = vsyncpa [#allocation3], 1
    %s1010 = scalar_lea.sflag [#allocation3], 1
    %1011 = vsyncpa %s1010, 1
    %1012 = vsyncpa [#allocation6], 1
    %1013 = vsyncpa [#allocation4], 1
    %s1014 = scalar_lea.sflag [#allocation4], 1
    %1015 = vsyncpa %s1014, 1

</llo_original>
